<compile_context>
chip_gen: v5e
topology: v5e:2x2
jax: 0.10.0
libtpu: 0.0.40
codegen_flags: <defaults>
</compile_context>

<pallas_src>
import math

import jax
import jax.numpy as jnp
from jax.experimental import pallas as pl
from jax.experimental.pallas import tpu as pltpu


# 512*1024 f32 = 2 MiB per stream; 3 streams (1 in + 2 out), double-buffered,
# <= 12 MiB VMEM -> fits v5e (16 MiB default scoped), v6e, v7x (64 MiB phys).
_MAX_BLOCK_ELEMS = 512 * 1024
_VMEM_LIMIT_BYTES = 32 << 20          # intentional; < 64 MiB physical on v7x
_LANE_CHOICES = (2048, 1536, 1024, 512, 384, 256, 128)


def _binarization_kernel(s_ref, xb_ref, sat_ref):
    # s_ref:   (tr, lane) input tile (any float dtype)
    # xb_ref:  (tr, lane) -> (sigma > 0) in binary dtype (float32 by default)
    # sat_ref: (tr, lane) -> clamp(1.2*sigmoid(sigma) - 0.1, 0, 1) in input dtype
    s = s_ref[...].astype(jnp.float32)
    sat = jnp.clip(1.2 * jax.nn.sigmoid(s) - 0.1, 0.0, 1.0)
    xb_ref[...] = (s > 0.0).astype(xb_ref.dtype)
    sat_ref[...] = sat.astype(sat_ref.dtype)


def binarization_forward(sigma, *, binary_dtype=jnp.float32):
    """Eval-mode BinarizationLayer forward.

    Returns (x, sat_sigma):
      x         = (sigma > 0) cast to `binary_dtype` (float32 matches torch .float();
                  pass bf16/int8 here to shrink the HBM write stream if desired)
      sat_sigma = clamp(1.2*sigmoid(sigma) - 0.1, 0, 1), in sigma's dtype.
    """
    # TODO(synk): training-mode path (Gaussian noise + host random.random()
    # straight-through binarize choice) is not implemented; eval semantics only.
    orig_shape = sigma.shape
    in_dtype = sigma.dtype
    total = int(math.prod(orig_shape)) if orig_shape else 1

    if total == 0:
        return (jnp.zeros(orig_shape, binary_dtype), jnp.zeros(orig_shape, in_dtype))

    # ---- lane-dense (rows, lane) slab; copy-free whenever total % 128 == 0 ----
    needs_pad = (total % 128) != 0
    padded_total = pl.cdiv(total, 128) * 128 if needs_pad else total
    lane = next(l for l in _LANE_CHOICES if padded_total % l == 0)
    rows = padded_total // lane

    flat = jnp.ravel(sigma)
    if needs_pad:
        flat = jnp.pad(flat, (0, padded_total - total))
    x2d = flat.reshape(rows, lane)   # bitcast reshape (no copy) when not padded

    # ---- row-block size: multiple of 8 (or == rows), VMEM-capped, and split
    # into >= 2 blocks when possible so both v7x TensorCores get work ----
    max_tr = _MAX_BLOCK_ELEMS // lane
    if rows <= 8:
        tr = rows                                            # single full-dim block
    else:
        tr = min(max_tr, ((pl.cdiv(rows, 2) + 7) // 8) * 8)  # multiple of 8
    grid = (pl.cdiv(rows, tr),)                              # ragged last block OK

    in_itemsize = jnp.dtype(in_dtype).itemsize
    bin_itemsize = jnp.dtype(binary_dtype).itemsize
    cost = pl.CostEstimate(
        flops=5 * padded_total,
        transcendentals=padded_total,                              # one sigmoid/elem
        bytes_accessed=padded_total * (2 * in_itemsize + bin_itemsize),
    )

    xb2d, sat2d = pl.pallas_call(
        _binarization_kernel,
        out_shape=(
            jax.ShapeDtypeStruct((rows, lane), binary_dtype),
            jax.ShapeDtypeStruct((rows, lane), in_dtype),
        ),
        grid=grid,
        in_specs=[pl.BlockSpec((tr, lane), lambda i: (i, 0))],
        out_specs=(
            pl.BlockSpec((tr, lane), lambda i: (i, 0)),
            pl.BlockSpec((tr, lane), lambda i: (i, 0)),
        ),
        compiler_params=pltpu.CompilerParams(
            dimension_semantics=("parallel",),
            vmem_limit_bytes=_VMEM_LIMIT_BYTES,
        ),
        cost_estimate=cost,
    )(x2d)

    if needs_pad:
        xb = xb2d.reshape(-1)[:total].reshape(orig_shape)
        sat = sat2d.reshape(-1)[:total].reshape(orig_shape)
    else:
        xb = xb2d.reshape(orig_shape)
        sat = sat2d.reshape(orig_shape)
    return xb, sat


def _reference(sigma):
    sat = jnp.clip(1.2 * jax.nn.sigmoid(sigma) - 0.1, 0.0, 1.0)
    xb = (sigma > 0.0).astype(jnp.float32)
    return xb, sat


if __name__ == "__main__":
    key = jax.random.PRNGKey(0)

    # Shape implied by the module's typical (feature-map selection) use.
    sigma = jax.random.normal(key, (2, 4, 16, 16), dtype=jnp.float32)
    x_b, sat_sigma = binarization_forward(sigma)
    jax.block_until_ready((x_b, sat_sigma))

    ref_xb, ref_sat = _reference(sigma)
    assert x_b.shape == sigma.shape and sat_sigma.shape == sigma.shape
    assert x_b.dtype == jnp.float32
    assert jnp.array_equal(x_b, ref_xb)
    assert jnp.allclose(sat_sigma, ref_sat, atol=1e-6)

    # Extra small shapes: ragged element count (pad fallback) and a 2-block grid.
    for shape in ((3, 5, 7), (8, 256, 128)):
        s = jax.random.normal(jax.random.PRNGKey(1), shape, dtype=jnp.float32)
        xb, sat = binarization_forward(s)
        jax.block_until_ready((xb, sat))
        rxb, rsat = _reference(s)
        assert jnp.array_equal(xb, rxb)
        assert jnp.allclose(sat, rsat, atol=1e-6)

    print("KERNEL_OK")
</pallas_src>

<mosaic_0001>
module attributes {stable_mosaic.version = 11 : i64} {
  func.func @_binarization_kernel(%arg0: i32, %arg1: memref<1x2048xf32, #tpu.memory_space<vmem>>, %arg2: memref<1x2048xf32, #tpu.memory_space<vmem>>, %arg3: memref<1x2048xf32, #tpu.memory_space<vmem>>) attributes {dimension_semantics = [#tpu.dimension_semantics<parallel>], iteration_bounds = array<i64: 1>, scalar_prefetch = 0 : i64, scratch_operands = 0 : i64, tpu.core_type = #tpu.core_type<tc>, window_params = [{transform_indices = @transform_0, window_bounds = array<i64: 1, 2048>}, {transform_indices = @transform_1, window_bounds = array<i64: 1, 2048>}, {transform_indices = @transform_2, window_bounds = array<i64: 1, 2048>}]} {
    %c0 = arith.constant 0 : index
    %c0_0 = arith.constant 0 : index
    %0 = vector.load %arg1[%c0, %c0_0] : memref<1x2048xf32, #tpu.memory_space<vmem>>, vector<1x2048xf32>
    %1 = arith.negf %0 : vector<1x2048xf32>
    %2 = math.exp %1 : vector<1x2048xf32>
    %cst = arith.constant 1.000000e+00 : f32
    %3 = vector.broadcast %cst : f32 to vector<1x2048xf32>
    %4 = arith.addf %3, %2 : vector<1x2048xf32>
    %5 = arith.divf %3, %4 : vector<1x2048xf32>
    %cst_1 = arith.constant 1.200000e+00 : f32
    %6 = vector.broadcast %cst_1 : f32 to vector<1x2048xf32>
    %7 = arith.mulf %6, %5 : vector<1x2048xf32>
    %cst_2 = arith.constant 1.000000e-01 : f32
    %8 = vector.broadcast %cst_2 : f32 to vector<1x2048xf32>
    %9 = arith.subf %7, %8 : vector<1x2048xf32>
    %cst_3 = arith.constant 0.000000e+00 : f32
    %cst_4 = arith.constant 1.000000e+00 : f32
    %10 = vector.broadcast %cst_3 : f32 to vector<1x2048xf32>
    %11 = arith.maximumf %10, %9 : vector<1x2048xf32>
    %12 = vector.broadcast %cst_4 : f32 to vector<1x2048xf32>
    %13 = arith.minimumf %12, %11 : vector<1x2048xf32>
    %cst_5 = arith.constant 0.000000e+00 : f32
    %14 = vector.broadcast %cst_5 : f32 to vector<1x2048xf32>
    %15 = arith.cmpf ogt, %0, %14 : vector<1x2048xf32>
    %16 = arith.extui %15 : vector<1x2048xi1> to vector<1x2048xi32>
    %17 = arith.sitofp %16 : vector<1x2048xi32> to vector<1x2048xf32>
    %c0_6 = arith.constant 0 : index
    %c0_7 = arith.constant 0 : index
    %18 = vector.load %arg2[%c0_6, %c0_7] : memref<1x2048xf32, #tpu.memory_space<vmem>>, vector<1x2048xf32>
    tpu.vector_store %arg2[%c0_6, %c0_7], %17 {strides = array<i32>} : memref<1x2048xf32, #tpu.memory_space<vmem>>, vector<1x2048xf32>,
    %c0_8 = arith.constant 0 : index
    %c0_9 = arith.constant 0 : index
    %19 = vector.load %arg3[%c0_8, %c0_9] : memref<1x2048xf32, #tpu.memory_space<vmem>>, vector<1x2048xf32>
    tpu.vector_store %arg3[%c0_8, %c0_9], %13 {strides = array<i32>} : memref<1x2048xf32, #tpu.memory_space<vmem>>, vector<1x2048xf32>,
    return
  }
  func.func @transform_0(%arg0: i32) -> (i32, i32) {
    %c0_i32 = arith.constant 0 : i32
    %c0_i32_0 = arith.constant 0 : i32
    return %arg0, %c0_i32 : i32, i32
  }
  func.func @transform_1(%arg0: i32) -> (i32, i32) {
    %c0_i32 = arith.constant 0 : i32
    %c0_i32_0 = arith.constant 0 : i32
    return %arg0, %c0_i32 : i32, i32
  }
  func.func @transform_2(%arg0: i32) -> (i32, i32) {
    %c0_i32 = arith.constant 0 : i32
    %c0_i32_0 = arith.constant 0 : i32
    return %arg0, %c0_i32 : i32, i32
  }
}

</mosaic_0001>

<llo_original>
// kernel: tpu_custom_call.1
$region0: #{tpu_custom_call.1}
  #allocation0 [shape = 'u32[]', space=smem, size = 0x4, offset = 0x4, fixed_abs, tag = 'smem constant byte address 0x4 - core index']
  #allocation1 [shape = 'u32[72,128]{1,0:T(1,128)}', space=vmem, size = 0x9000, scoped, tag = 'internal scratch']
  %s0 = inlined_call_operand.hbm [shape: f32[1,2048], index: 0, kind: input, shape index: {}]
  %s1 = inlined_call_operand.hbm [shape: f32[1,2048], index: 1, kind: output, shape index: {0}]
  %s2 = inlined_call_operand.hbm [shape: f32[1,2048], index: 2, kind: output, shape index: {1}]
  %3 = xla_tuple %s1, %s2
  %s4 = sld [smem:[#allocation0]]
  $region26: #{tpu_custom_call.1} parent=0
    _
  %s6 = ssub.s32 1, %s4
  %s7 = scalar_select 0, %s6, %s4
  $region1: #{tpu_custom_call.1} parent=0
    #allocation2 [shape = 'u8[8192]{0}', space=vmem, size = 0x2000, scoped, tag = 'input window, operand 0, single buffered']
    #allocation3 [shape = 's32[1]{0}', space=sflag, size = 0x4, scoped, tag = 'scoped memory for tpu_custom_call.1']
    #allocation4 [shape = 's32[1]{0}', space=sflag, size = 0x4, scoped, tag = 'scoped memory for tpu_custom_call.1']
    #allocation5 [shape = 'u8[8192]{0}', space=vmem, size = 0x2000, scoped, tag = 'output window, operand 0, single buffered']
    #allocation6 [shape = 'u8[8192]{0}', space=vmem, size = 0x2000, scoped, tag = 'output window, operand 1, single buffered']
    #allocation7 [shape = 's32[1]{0}', space=sflag, size = 0x4, scoped, tag = 'scoped memory for tpu_custom_call.1']
    %8 = vsyncpa [#allocation3], 0
    %9 = vsyncpa [#allocation4], 0
    %10 = vsyncpa [#allocation7], 0
    // Predicated region
    $region2: #{tpu_custom_call.1} parent=1 // pred_check
      _
    $region3: #{tpu_custom_call.1} parent=1 // pred_check_branch
      %12 = sbr.rel (0) target = $region5
    $region4: #{tpu_custom_call.1} parent=1 // pred_region
      %14 = vsyncadd [#allocation3], 0
      %s16 = sshll.u32 %s0, 4
      %s17 = int_to_ptr.hbm [resolvable:$true] %s16
      %s18 = sshll.u32 [#allocation2], 4
      %s19 = int_to_ptr.vmem [resolvable:$true] %s18
      %21 = dma.hbm_to_vmem [thread:$0]  %s17, 256, %s19, [#allocation3]
    $region5: #{tpu_custom_call.1} parent=1 // pred_fallthru
      _
    // Predicated region
    $region6: #{tpu_custom_call.1} parent=1 // pred_check
      _
    $region7: #{tpu_custom_call.1} parent=1 // pred_check_branch
      %23 = sbr.rel (0) target = $region9
    $region8: #{tpu_custom_call.1} parent=1 // pred_region
      %25 = dma.done [#allocation3], 256
    $region9: #{tpu_custom_call.1} parent=1 // pred_fallthru
      _
    %v26 = vld [vmem:[#allocation2] sm:$0xff]
    %v27 = vld [vmem:[#allocation2 + $0x8] sm:$0xff]
    %v28 = vxor.u32 %v26, 2147483648
    %v29 = vxor.u32 %v27, 2147483648
    %v30 = vmul.f32 %v28, 1.442695
    %v31 = vpow.pop %v30
    %v32 = vmul.f32 %v29, 1.442695
    %v33 = vpow.pop %v32
    %v34 = vadd.f32 %v31, 1.0
    %v35 = vadd.f32 %v33, 1.0
    %v36 = vrcp.pop %v34
    %v37 = vmul.f32 %v34, %v36
    %v38 = vsub.f32 1.0, %v37
    %v39 = vmul.f32 %v36, %v38
    %v40 = vadd.f32 %v36, %v39
    %vm41 = vweird.f32 %v34
    %vm42 = vweird.f32 %v36
    %vm43 = vmor %vm41, %vm42
    %v44 = vsel %vm43, %v36, %v40
    %v45 = vand.u32 2147483647, %v34
    %vm46 = vcmp.eq.f32.partialorder %v45, 8.507059e+37
    %v47 = vand.u32 %v34, 2147483648
    %v48 = vor.u32 1.1754944e-38, %v47
    %v49 = vsel %vm46, %v48, %v44
    %v50 = vmul.f32 1.0, %v49
    %v51 = vrcp.pop %v35
    %v52 = vmul.f32 %v35, %v51
    %v53 = vsub.f32 1.0, %v52
    %v54 = vmul.f32 %v51, %v53
    %v55 = vadd.f32 %v51, %v54
    %vm56 = vweird.f32 %v35
    %vm57 = vweird.f32 %v51
    %vm58 = vmor %vm56, %vm57
    %v59 = vsel %vm58, %v51, %v55
    %v60 = vand.u32 2147483647, %v35
    %vm61 = vcmp.eq.f32.partialorder %v60, 8.507059e+37
    %v62 = vand.u32 %v35, 2147483648
    %v63 = vor.u32 1.1754944e-38, %v62
    %v64 = vsel %vm61, %v63, %v59
    %v65 = vmul.f32 1.0, %v64
    %v66 = vmul.f32 %v50, 1.2
    %v67 = vmul.f32 %v65, 1.2
    %v68 = vsub.f32 %v66, 0.1
    %v69 = vsub.f32 %v67, 0.1
    %v70 = vmax.f32 %v68, 0.0
    %v71 = vmax.f32 %v69, 0.0
    %v72 = vmin.f32 %v70, 1.0
    %v73 = vmin.f32 %v71, 1.0
    %vm74 = vcmp.gt.f32.partialorder %v26, 0.0
    %vm75 = vcmp.gt.f32.partialorder %v27, 0.0
    %v76 = vsel %vm74, 1, 0
    %v77 = vsel %vm75, 1, 0
    %v78 = vcvt.s32.f32 %v76
    %v79 = vcvt.s32.f32 %v77
    %80 = vst [vmem:[#allocation5] sm:$0xff] %v78
    %81 = vst [vmem:[#allocation5 + $0x8] sm:$0xff] %v79
    %82 = vst [vmem:[#allocation6] sm:$0xff] %v72
    %83 = vst [vmem:[#allocation6 + $0x8] sm:$0xff] %v73
    // Predicated region
    $region10: #{tpu_custom_call.1} parent=1 // pred_check
      _
    $region11: #{tpu_custom_call.1} parent=1 // pred_check_branch
      %85 = sbr.rel (0) target = $region13
    $region12: #{tpu_custom_call.1} parent=1 // pred_region
      %87 = vsyncadd [#allocation4], 0
      %s89 = sshll.u32 [#allocation5], 4
      %s90 = int_to_ptr.vmem [resolvable:$true] %s89
      %s91 = sshll.u32 %s1, 4
      %s92 = int_to_ptr.hbm [resolvable:$true] %s91
      %94 = dma.vmem_to_hbm [thread:$0]  %s90, 256, %s92, [#allocation4]
    $region13: #{tpu_custom_call.1} parent=1 // pred_fallthru
      _
    // Predicated region
    $region14: #{tpu_custom_call.1} parent=1 // pred_check
      _
    $region15: #{tpu_custom_call.1} parent=1 // pred_check_branch
      %96 = sbr.rel (0) target = $region17
    $region16: #{tpu_custom_call.1} parent=1 // pred_region
      %98 = vsyncadd [#allocation7], 0
      %s100 = sshll.u32 [#allocation6], 4
      %s101 = int_to_ptr.vmem [resolvable:$true] %s100
      %s102 = sshll.u32 %s2, 4
      %s103 = int_to_ptr.hbm [resolvable:$true] %s102
      %105 = dma.vmem_to_hbm [thread:$0]  %s101, 256, %s103, [#allocation7]
    $region17: #{tpu_custom_call.1} parent=1 // pred_fallthru
      _
    // Predicated region
    $region18: #{tpu_custom_call.1} parent=1 // pred_check
      _
    $region19: #{tpu_custom_call.1} parent=1 // pred_check_branch
      %107 = sbr.rel (0) target = $region21
    $region20: #{tpu_custom_call.1} parent=1 // pred_region
      %109 = dma.done [#allocation4], 256
    $region21: #{tpu_custom_call.1} parent=1 // pred_fallthru
      _
    // Predicated region
    $region22: #{tpu_custom_call.1} parent=1 // pred_check
      _
    $region23: #{tpu_custom_call.1} parent=1 // pred_check_branch
      %111 = sbr.rel (0) target = $region25
    $region24: #{tpu_custom_call.1} parent=1 // pred_region
      %113 = dma.done [#allocation7], 256
    $region25: #{tpu_custom_call.1} parent=1 // pred_fallthru
      _
    %114 = vsyncpa [#allocation3], 1
    %115 = vsyncpa [#allocation4], 1
    %116 = vsyncpa [#allocation7], 1

</llo_original>
